<compile_context>
chip_gen: v6e
topology: v6e:2x2x1
jax: 0.10.0
libtpu: 0.0.40
codegen_flags: <defaults>
</compile_context>

<pallas_src>
import math
from functools import partial

import jax
import jax.numpy as jnp
from jax.experimental import pallas as pl
from jax.experimental.pallas import tpu as pltpu


# ----------------------------------------------------------------------------
# tiling helpers (respect the (8,128) block constraints)
# ----------------------------------------------------------------------------
def _tile_sub(dim, target):
    """Tile for a sublane-ish dim: full dim or a multiple of 8."""
    if dim <= target:
        return dim
    for c in (target, 512, 256, 128, 64, 32, 16, 8):
        if c <= target and c % 8 == 0 and dim % c == 0:
            return c
    return dim


def _tile_lane(dim, target):
    """Tile for a lane dim: full dim or a multiple of 128."""
    if dim <= target:
        return dim
    for c in (target, 512, 256, 128):
        if c <= target and c % 128 == 0 and dim % c == 0:
            return c
    return dim


# ----------------------------------------------------------------------------
# Tiled matmul + bias (+ optional relu^2, + optional fused residual add)
# ----------------------------------------------------------------------------
def _matmul_kernel(*refs, act, has_res):
    if has_res:
        x_ref, w_ref, b_ref, r_ref, o_ref, acc_ref = refs
    else:
        x_ref, w_ref, b_ref, o_ref, acc_ref = refs
        r_ref = None
    k = pl.program_id(2)

    @pl.when(k == 0)
    def _():
        acc_ref[...] = jnp.zeros_like(acc_ref)

    acc_ref[...] += jnp.dot(x_ref[...], w_ref[...],
                            preferred_element_type=jnp.float32)

    @pl.when(k == pl.num_programs(2) - 1)
    def _():
        y = acc_ref[...] + b_ref[...]
        if act == "relu2":  # Persimmon hidden_act = "relu2"
            y = jnp.square(jnp.maximum(y, 0.0))
        if has_res:
            y = y + r_ref[...].astype(jnp.float32)
        o_ref[...] = y.astype(o_ref.dtype)


def matmul_bias(x, w, b, act="none", residual=None, tm=128, tn=256, tk=256):
    """x:(M,K) bf16 @ w:(K,N) bf16 + b:(N,) f32 [+ residual:(M,N)] -> (M,N)."""
    M, K = x.shape
    K2, N = w.shape
    assert K == K2
    tm = _tile_sub(M, tm)
    tn = _tile_lane(N, tn)
    tk = _tile_lane(K, tk)
    grid = (M // tm, N // tn, K // tk)

    in_specs = [
        pl.BlockSpec((tm, tk), lambda i, j, k: (i, k)),
        pl.BlockSpec((tk, tn), lambda i, j, k: (k, j)),
        pl.BlockSpec((1, tn), lambda i, j, k: (0, j)),
    ]
    args = [x, w, b.reshape(1, N).astype(jnp.float32)]
    if residual is not None:
        in_specs.append(pl.BlockSpec((tm, tn), lambda i, j, k: (i, j)))
        args.append(residual)

    return pl.pallas_call(
        partial(_matmul_kernel, act=act, has_res=residual is not None),
        out_shape=jax.ShapeDtypeStruct((M, N), x.dtype),
        grid=grid,
        in_specs=in_specs,
        out_specs=pl.BlockSpec((tm, tn), lambda i, j, k: (i, j)),
        scratch_shapes=[pltpu.VMEM((tm, tn), jnp.float32)],
        compiler_params=pltpu.CompilerParams(
            dimension_semantics=("parallel", "parallel", "arbitrary")),
        cost_estimate=pl.CostEstimate(
            flops=2 * M * K * N, transcendentals=0,
            bytes_accessed=2 * (M * K + K * N + M * N)),
    )(*args)


# ----------------------------------------------------------------------------
# LayerNorm fused into the consumer matmul (LN recomputed per N-tile: cheap vs MXU)
# ----------------------------------------------------------------------------
def _ln_linear_kernel(x_ref, g_ref, bt_ref, w_ref, b_ref, o_ref, *, act, eps):
    x = x_ref[...].astype(jnp.float32)
    mu = jnp.mean(x, axis=-1, keepdims=True)
    var = jnp.mean(jnp.square(x - mu), axis=-1, keepdims=True)
    xn = (x - mu) * jax.lax.rsqrt(var + eps) * g_ref[...] + bt_ref[...]
    y = jnp.dot(xn.astype(w_ref.dtype), w_ref[...],
                preferred_element_type=jnp.float32)
    y = y + b_ref[...]
    if act == "relu2":
        y = jnp.square(jnp.maximum(y, 0.0))
    o_ref[...] = y.astype(o_ref.dtype)


def ln_linear(x, gamma, beta, w, b, act="none", eps=1e-5, tm=128, tn=256):
    """LayerNorm(x) @ w + b, fused in one kernel.  x:(M,K), w:(K,N)."""
    M, K = x.shape
    K2, N = w.shape
    assert K == K2
    tm = _tile_sub(M, tm)
    tn = _tile_lane(N, tn)
    grid = (M // tm, N // tn)
    return pl.pallas_call(
        partial(_ln_linear_kernel, act=act, eps=eps),
        out_shape=jax.ShapeDtypeStruct((M, N), x.dtype),
        grid=grid,
        in_specs=[
            pl.BlockSpec((tm, K), lambda i, j: (i, 0)),
            pl.BlockSpec((1, K), lambda i, j: (0, 0)),
            pl.BlockSpec((1, K), lambda i, j: (0, 0)),
            pl.BlockSpec((K, tn), lambda i, j: (0, j)),
            pl.BlockSpec((1, tn), lambda i, j: (0, j)),
        ],
        out_specs=pl.BlockSpec((tm, tn), lambda i, j: (i, j)),
        compiler_params=pltpu.CompilerParams(
            dimension_semantics=("parallel", "parallel")),
        cost_estimate=pl.CostEstimate(
            flops=2 * M * K * N, transcendentals=0,
            bytes_accessed=2 * (M * K + K * N + M * N)),
    )(x, gamma.reshape(1, K).astype(jnp.float32),
      beta.reshape(1, K).astype(jnp.float32),
      w, b.reshape(1, N).astype(jnp.float32))


# ----------------------------------------------------------------------------
# Standalone LayerNorm (final norm)
# ----------------------------------------------------------------------------
def _layernorm_kernel(x_ref, g_ref, b_ref, o_ref, *, eps):
    x = x_ref[...].astype(jnp.float32)
    mu = jnp.mean(x, axis=-1, keepdims=True)
    var = jnp.mean(jnp.square(x - mu), axis=-1, keepdims=True)
    y = (x - mu) * jax.lax.rsqrt(var + eps) * g_ref[...] + b_ref[...]
    o_ref[...] = y.astype(o_ref.dtype)


def layernorm(x, gamma, beta, eps=1e-5, tm=128):
    M, H = x.shape
    tm = _tile_sub(M, tm)
    return pl.pallas_call(
        partial(_layernorm_kernel, eps=eps),
        out_shape=jax.ShapeDtypeStruct((M, H), x.dtype),
        grid=(M // tm,),
        in_specs=[
            pl.BlockSpec((tm, H), lambda i: (i, 0)),
            pl.BlockSpec((1, H), lambda i: (0, 0)),
            pl.BlockSpec((1, H), lambda i: (0, 0)),
        ],
        out_specs=pl.BlockSpec((tm, H), lambda i: (i, 0)),
        compiler_params=pltpu.CompilerParams(dimension_semantics=("parallel",)),
    )(x, gamma.reshape(1, H).astype(jnp.float32),
      beta.reshape(1, H).astype(jnp.float32))


# ----------------------------------------------------------------------------
# Fused per-head qk-LayerNorm + Neox partial rotary
# ----------------------------------------------------------------------------
def _qkln_rope_kernel(q_ref, k_ref, cos_ref, sin_ref,
                      qg_ref, qb_ref, kg_ref, kb_ref,
                      qo_ref, ko_ref, *, rd, eps):
    half = rd // 2
    c = cos_ref[...]  # (tm, 1, half) f32
    s = sin_ref[...]

    def _one(x_ref, g_ref, b_ref, o_ref):
        x = x_ref[...].astype(jnp.float32)               # (tm, nh, hd)
        mu = jnp.mean(x, axis=-1, keepdims=True)
        var = jnp.mean(jnp.square(x - mu), axis=-1, keepdims=True)
        xn = (x - mu) * jax.lax.rsqrt(var + eps) * g_ref[...] + b_ref[...]
        x1 = xn[..., :half]
        x2 = xn[..., half:rd]
        r1 = x1 * c - x2 * s
        r2 = x2 * c + x1 * s
        parts = [r1, r2]
        if rd < xn.shape[-1]:
            parts.append(xn[..., rd:])                   # pass-through dims
        o_ref[...] = jnp.concatenate(parts, axis=-1).astype(o_ref.dtype)

    _one(q_ref, qg_ref, qb_ref, qo_ref)
    _one(k_ref, kg_ref, kb_ref, ko_ref)


def qk_norm_rope(q3, k3, cos3, sin3, qg, qb, kg, kb, rd, eps=1e-5, tm=128):
    """q3,k3: (T, nh, hd); cos3,sin3: (T,1,rd//2). Returns rotated/normed q,k."""
    T, nh, hd = q3.shape
    half = rd // 2
    tm = _tile_sub(T, tm)
    row_spec = pl.BlockSpec((tm, nh, hd), lambda i: (i, 0, 0))
    cs_spec = pl.BlockSpec((tm, 1, half), lambda i: (i, 0, 0))
    par_spec = pl.BlockSpec((1, 1, hd), lambda i: (0, 0, 0))
    return pl.pallas_call(
        partial(_qkln_rope_kernel, rd=rd, eps=eps),
        out_shape=(jax.ShapeDtypeStruct((T, nh, hd), q3.dtype),
                   jax.ShapeDtypeStruct((T, nh, hd), k3.dtype)),
        grid=(T // tm,),
        in_specs=[row_spec, row_spec, cs_spec, cs_spec,
                  par_spec, par_spec, par_spec, par_spec],
        out_specs=(row_spec, row_spec),
        compiler_params=pltpu.CompilerParams(dimension_semantics=("parallel",)),
    )(q3, k3, cos3, sin3,
      qg.reshape(1, 1, hd).astype(jnp.float32),
      qb.reshape(1, 1, hd).astype(jnp.float32),
      kg.reshape(1, 1, hd).astype(jnp.float32),
      kb.reshape(1, 1, hd).astype(jnp.float32))


# ----------------------------------------------------------------------------
# Flash-style causal attention (online softmax, causal kv-block pruning)
# ----------------------------------------------------------------------------
def _flash_attn_kernel(q_ref, k_ref, v_ref, o_ref, m_sc, l_sc, acc_sc,
                       *, tq, tk, scale):
    qi = pl.program_id(0)
    ki = pl.program_id(1)
    last_ki = (qi * tq + tq - 1) // tk      # last kv block intersecting the causal mask

    @pl.when(ki == 0)
    def _():
        m_sc[...] = jnp.full_like(m_sc, -1e30)
        l_sc[...] = jnp.zeros_like(l_sc)
        acc_sc[...] = jnp.zeros_like(acc_sc)

    @pl.when(ki <= last_ki)
    def _():
        q = q_ref[...] * scale                              # scale folded into q (bf16)
        s = jnp.einsum("hqd,hkd->hqk", q, k_ref[...],
                       preferred_element_type=jnp.float32)  # (nh, tq, tk) f32
        row = qi * tq + jax.lax.broadcasted_iota(jnp.int32, (tq, tk), 0)
        col = ki * tk + jax.lax.broadcasted_iota(jnp.int32, (tq, tk), 1)
        s = jnp.where((col <= row)[None, :, :], s, -1e30)

        m_prev = m_sc[...]
        m_new = jnp.maximum(m_prev, jnp.max(s, axis=-1, keepdims=True))
        alpha = jnp.exp(m_prev - m_new)
        p = jnp.exp(s - m_new)
        l_sc[...] = alpha * l_sc[...] + jnp.sum(p, axis=-1, keepdims=True)
        acc_sc[...] = alpha * acc_sc[...] + jnp.einsum(
            "hqk,hkd->hqd", p.astype(v_ref.dtype), v_ref[...],
            preferred_element_type=jnp.float32)
        m_sc[...] = m_new

    @pl.when(ki == last_ki)
    def _():
        inv = pl.reciprocal(l_sc[...], approx=True)         # EUP, free-ish
        o_ref[...] = (acc_sc[...] * inv).astype(o_ref.dtype)


def flash_attention(q, k, v, *, tq=128, tk=128):
    """Causal self-attention. q,k,v: (num_heads, T, head_dim) bf16 -> same shape."""
    NH, T, D = q.shape
    scale = 1.0 / math.sqrt(D)
    tq = _tile_sub(T, tq)
    tk = _tile_sub(T, tk)
    nq, nkv = T // tq, T // tk

    def q_map(qi, ki):
        return (0, qi, 0)

    def kv_map(qi, ki):
        # clamp so pruned (above-diagonal) steps re-use the resident block (no DMA)
        last = (qi * tq + tq - 1) // tk
        return (0, jnp.minimum(ki, last), 0)

    return pl.pallas_call(
        partial(_flash_attn_kernel, tq=tq, tk=tk, scale=scale),
        out_shape=jax.ShapeDtypeStruct((NH, T, D), q.dtype),
        grid=(nq, nkv),
        in_specs=[
            pl.BlockSpec((NH, tq, D), q_map),
            pl.BlockSpec((NH, tk, D), kv_map),
            pl.BlockSpec((NH, tk, D), kv_map),
        ],
        out_specs=pl.BlockSpec((NH, tq, D), q_map),
        scratch_shapes=[
            pltpu.VMEM((NH, tq, 1), jnp.float32),
            pltpu.VMEM((NH, tq, 1), jnp.float32),
            pltpu.VMEM((NH, tq, D), jnp.float32),
        ],
        compiler_params=pltpu.CompilerParams(
            dimension_semantics=("parallel", "arbitrary")),
        cost_estimate=pl.CostEstimate(
            flops=2 * NH * T * T * D,            # ~halved by causal pruning
            transcendentals=NH * T * T // 2,
            bytes_accessed=8 * NH * T * D),
    )(q, k, v)


# ----------------------------------------------------------------------------
# Model glue (plain JAX)
# ----------------------------------------------------------------------------
def rope_cos_sin(positions, rd, theta):
    half = rd // 2
    inv_freq = 1.0 / (theta ** (jnp.arange(0, rd, 2, dtype=jnp.float32) / rd))
    freqs = positions.astype(jnp.float32)[:, None] * inv_freq[None, :]   # (T, half)
    return jnp.cos(freqs)[:, None, :], jnp.sin(freqs)[:, None, :]        # (T,1,half)


def persimmon_layer(x, cos3, sin3, p, cfg):
    T, H = x.shape
    nh, hd = cfg["num_heads"], cfg["head_dim"]

    # ---- attention block: LN fused into qkv projection
    qkv = ln_linear(x, p["ln1_g"], p["ln1_b"], p["qkv_w"], p["qkv_b"])   # (T, 3H)
    q, k, v = jnp.split(qkv, 3, axis=-1)
    q3 = q.reshape(T, nh, hd)
    k3 = k.reshape(T, nh, hd)
    v3 = v.reshape(T, nh, hd)
    q3, k3 = qk_norm_rope(q3, k3, cos3, sin3,
                          p["q_ln_g"], p["q_ln_b"], p["k_ln_g"], p["k_ln_b"],
                          rd=cfg["rotary_dim"])
    qh = jnp.transpose(q3, (1, 0, 2))
    kh = jnp.transpose(k3, (1, 0, 2))
    vh = jnp.transpose(v3, (1, 0, 2))
    oh = flash_attention(qh, kh, vh,
                         tq=cfg["attn_block_q"], tk=cfg["attn_block_kv"])
    attn = jnp.transpose(oh, (1, 0, 2)).reshape(T, H)
    h = matmul_bias(attn, p["dense_w"], p["dense_b"], residual=x)        # + residual

    # ---- MLP block: LN fused into fc1, relu^2 fused, residual fused into fc2
    mlp = ln_linear(h, p["ln2_g"], p["ln2_b"], p["fc1_w"], p["fc1_b"], act="relu2")
    return matmul_bias(mlp, p["fc2_w"], p["fc2_b"], residual=h)


def fuyu_forward(params, cfg, input_ids, positions, pixel_values):
    # --- vision path: flatten_bn + vision_embed_tokens (ColumnParallelLinear)
    B, P, F = pixel_values.shape
    patches = pixel_values.reshape(B * P, F).astype(jnp.bfloat16)
    vision_embeddings = matmul_bias(patches, params["vision_w"], params["vision_b"])

    # --- text embeddings + merge at image-token positions (plain JAX: XLA fuses it)
    inputs_embeds = jnp.take(params["embed_tokens"], input_ids, axis=0)  # (T, H) bf16
    mask = input_ids == cfg["image_token_id"]
    order = jnp.clip(jnp.cumsum(mask.astype(jnp.int32)) - 1, 0,
                     vision_embeddings.shape[0] - 1)
    vis_gathered = jnp.take(vision_embeddings, order, axis=0)
    hidden = jnp.where(mask[:, None], vis_gathered, inputs_embeds)

    # --- Persimmon language model (prefill, causal)
    cos3, sin3 = rope_cos_sin(positions, cfg["rotary_dim"], cfg["rope_theta"])
    for layer_params in params["layers"]:
        hidden = persimmon_layer(hidden, cos3, sin3, layer_params, cfg)
    return layernorm(hidden, params["final_ln_g"], params["final_ln_b"])


# ----------------------------------------------------------------------------
# Deterministic parameter init (weights bf16 for the MXU, biases/LN params f32)
# ----------------------------------------------------------------------------
def init_params(key, cfg):
    H = cfg["hidden_size"]
    F = cfg["image_feature_size"]
    I = cfg["intermediate_size"]
    hd = cfg["head_dim"]
    V = cfg["vocab_size"]

    def w_init(k, shape, scale=0.02):
        return (scale * jax.random.normal(k, shape, jnp.float32)).astype(jnp.bfloat16)

    keys = iter(jax.random.split(key, 64))
    params = {
        "vision_w": w_init(next(keys), (F, H)),
        "vision_b": jnp.zeros((H,), jnp.float32),
        "embed_tokens": w_init(next(keys), (V, H)),
        "final_ln_g": jnp.ones((H,), jnp.float32),
        "final_ln_b": jnp.zeros((H,), jnp.float32),
        "layers": [],
    }
    for _ in range(cfg["num_layers"]):
        params["layers"].append({
            "ln1_g": jnp.ones((H,), jnp.float32), "ln1_b": jnp.zeros((H,), jnp.float32),
            "ln2_g": jnp.ones((H,), jnp.float32), "ln2_b": jnp.zeros((H,), jnp.float32),
            "q_ln_g": jnp.ones((hd,), jnp.float32), "q_ln_b": jnp.zeros((hd,), jnp.float32),
            "k_ln_g": jnp.ones((hd,), jnp.float32), "k_ln_b": jnp.zeros((hd,), jnp.float32),
            "qkv_w": w_init(next(keys), (H, 3 * H)), "qkv_b": jnp.zeros((3 * H,), jnp.float32),
            "dense_w": w_init(next(keys), (H, H)), "dense_b": jnp.zeros((H,), jnp.float32),
            "fc1_w": w_init(next(keys), (H, I)), "fc1_b": jnp.zeros((I,), jnp.float32),
            "fc2_w": w_init(next(keys), (I, H)), "fc2_b": jnp.zeros((H,), jnp.float32),
        })
    return params


# ----------------------------------------------------------------------------
if __name__ == "__main__":
    # Small synthetic Fuyu config (real Fuyu: patch 30, hidden 4096, image token 71011)
    cfg = {
        "patch_size": 4,
        "num_channels": 3,
        "hidden_size": 128,
        "num_heads": 2,
        "head_dim": 64,
        "rotary_dim": 32,         # partial_rotary_factor = 0.5
        "rope_theta": 25000.0,
        "intermediate_size": 512,
        "num_layers": 2,
        "vocab_size": 256,
        "image_token_id": 71,     # small-vocab stand-in for _IMAGE_TOKEN_ID = 71011
        "attn_block_q": 8,        # small tiles so the test exercises multi-block flash
        "attn_block_kv": 8,       # (real sizes would use 128/128)
    }
    cfg["image_feature_size"] = cfg["patch_size"] ** 2 * cfg["num_channels"]  # 48

    key = jax.random.PRNGKey(0)
    k_param, k_pix, k_tok = jax.random.split(key, 3)

    params = init_params(k_param, cfg)

    # Inputs: 1 image of 6 patches, total sequence of 16 tokens (first 6 are image tokens).
    B, P, T = 1, 6, 16
    pixel_values = jax.random.normal(k_pix, (B, P, cfg["image_feature_size"]), jnp.float32)
    text_tokens = jax.random.randint(k_tok, (T - P,), 0, cfg["image_token_id"])
    input_ids = jnp.concatenate(
        [jnp.full((P,), cfg["image_token_id"], jnp.int32), text_tokens.astype(jnp.int32)]
    )
    positions = jnp.arange(T, dtype=jnp.int32)

    # --- sanity check 1: tiled matmul kernel vs plain jnp (bf16 operands, f32 math)
    xb = pixel_values.reshape(B * P, -1).astype(jnp.bfloat16)
    ref = xb.astype(jnp.float32) @ params["vision_w"].astype(jnp.float32) \
        + params["vision_b"][None, :]
    got = matmul_bias(xb, params["vision_w"], params["vision_b"]).astype(jnp.float32)
    assert bool(jnp.allclose(got, ref, atol=1e-2, rtol=1e-2))

    # --- sanity check 2: flash attention kernel vs naive causal reference
    nh, hd = cfg["num_heads"], cfg["head_dim"]
    kq1, kq2, kq3 = jax.random.split(jax.random.PRNGKey(1), 3)
    qt = jax.random.normal(kq1, (nh, T, hd), jnp.float32).astype(jnp.bfloat16)
    kt = jax.random.normal(kq2, (nh, T, hd), jnp.float32).astype(jnp.bfloat16)
    vt = jax.random.normal(kq3, (nh, T, hd), jnp.float32).astype(jnp.bfloat16)
    got_a = flash_attention(qt, kt, vt, tq=8, tk=8).astype(jnp.float32)
    qf, kf, vf = (a.astype(jnp.float32) for a in (qt, kt, vt))
    s = jnp.einsum("hqd,hkd->hqk", qf, kf) / math.sqrt(hd)
    causal = jnp.tril(jnp.ones((T, T), bool))
    s = jnp.where(causal[None], s, -jnp.inf)
    ref_a = jnp.einsum("hqk,hkd->hqd", jax.nn.softmax(s, axis=-1), vf)
    assert bool(jnp.allclose(got_a, ref_a, atol=5e-2, rtol=5e-2))

    # --- full forward
    hidden_states = fuyu_forward(params, cfg, input_ids, positions, pixel_values)
    hidden_states = jax.block_until_ready(hidden_states)

    assert hidden_states.shape == (T, cfg["hidden_size"])
    assert bool(jnp.all(jnp.isfinite(hidden_states.astype(jnp.float32))))
    print("KERNEL_OK")
</pallas_src>

<mosaic_0001>
module attributes {stable_mosaic.version = 11 : i64} {
  func.func @_matmul_kernel(%arg0: i32, %arg1: i32, %arg2: i32, %arg3: memref<6x48xbf16, #tpu.memory_space<vmem>>, %arg4: memref<48x128xbf16, #tpu.memory_space<vmem>>, %arg5: memref<1x128xf32, #tpu.memory_space<vmem>>, %arg6: memref<6x128xbf16, #tpu.memory_space<vmem>>, %arg7: memref<6x128xf32, #tpu.memory_space<vmem>>) attributes {dimension_semantics = [#tpu.dimension_semantics<parallel>, #tpu.dimension_semantics<parallel>, #tpu.dimension_semantics<arbitrary>], iteration_bounds = array<i64: 1, 1, 1>, scalar_prefetch = 0 : i64, scratch_operands = 1 : i64, tpu.core_type = #tpu.core_type<tc>, window_params = [{transform_indices = @transform_0, window_bounds = array<i64: 6, 48>}, {transform_indices = @transform_1, window_bounds = array<i64: 48, 128>}, {transform_indices = @transform_2, window_bounds = array<i64: 1, 128>}, {transform_indices = @transform_3, window_bounds = array<i64: 6, 128>}]} {
    %c0_i32 = arith.constant 0 : i32
    %0 = arith.cmpi eq, %arg2, %c0_i32 : i32
    %1 = arith.extui %0 : i1 to i32
    %c0_i32_0 = arith.constant 0 : i32
    %2 = arith.cmpi ne, %1, %c0_i32_0 : i32
    scf.if %2 {
      %cst_10 = arith.constant 0.000000e+00 : f32
      %12 = vector.broadcast %cst_10 : f32 to vector<6x128xf32>
      %c0_11 = arith.constant 0 : index
      %c0_12 = arith.constant 0 : index
      %13 = vector.load %arg7[%c0_11, %c0_12] : memref<6x128xf32, #tpu.memory_space<vmem>>, vector<6x128xf32>
      tpu.vector_store %arg7[%c0_11, %c0_12], %12 {strides = array<i32>} : memref<6x128xf32, #tpu.memory_space<vmem>>, vector<6x128xf32>,
    } else {
    }
    %c0 = arith.constant 0 : index
    %c0_1 = arith.constant 0 : index
    %3 = vector.load %arg7[%c0, %c0_1] : memref<6x128xf32, #tpu.memory_space<vmem>>, vector<6x128xf32>
    %c0_2 = arith.constant 0 : index
    %c0_3 = arith.constant 0 : index
    %4 = vector.load %arg3[%c0_2, %c0_3] : memref<6x48xbf16, #tpu.memory_space<vmem>>, vector<6x48xbf16>
    %c0_4 = arith.constant 0 : index
    %c0_5 = arith.constant 0 : index
    %5 = vector.load %arg4[%c0_4, %c0_5] : memref<48x128xbf16, #tpu.memory_space<vmem>>, vector<48x128xbf16>
    %cst = arith.constant dense<0.000000e+00> : vector<6x128xf32>
    %6 = tpu.matmul %4, %5, %cst {dimension_numbers = #tpu.dot_dimension_numbers<[1], [0], [0], [1], [0, 0, 1, 1], [], []>} : vector<6x48xbf16>, vector<48x128xbf16>, vector<6x128xf32> -> vector<6x128xf32>
    %7 = arith.addf %3, %6 : vector<6x128xf32>
    %c0_6 = arith.constant 0 : index
    %c0_7 = arith.constant 0 : index
    %8 = vector.load %arg7[%c0_6, %c0_7] : memref<6x128xf32, #tpu.memory_space<vmem>>, vector<6x128xf32>
    tpu.vector_store %arg7[%c0_6, %c0_7], %7 {strides = array<i32>} : memref<6x128xf32, #tpu.memory_space<vmem>>, vector<6x128xf32>,
    %c0_i32_8 = arith.constant 0 : i32
    %9 = arith.cmpi eq, %arg2, %c0_i32_8 : i32
    %10 = arith.extui %9 : i1 to i32
    %c0_i32_9 = arith.constant 0 : i32
    %11 = arith.cmpi ne, %10, %c0_i32_9 : i32
    scf.if %11 {
      %c0_10 = arith.constant 0 : index
      %c0_11 = arith.constant 0 : index
      %12 = vector.load %arg7[%c0_10, %c0_11] : memref<6x128xf32, #tpu.memory_space<vmem>>, vector<6x128xf32>
      %c0_12 = arith.constant 0 : index
      %c0_13 = arith.constant 0 : index
      %13 = vector.load %arg5[%c0_12, %c0_13] : memref<1x128xf32, #tpu.memory_space<vmem>>, vector<1x128xf32>
      %14 = vector.broadcast %13 : vector<1x128xf32> to vector<6x128xf32>
      %15 = arith.addf %12, %14 : vector<6x128xf32>
      %16 = arith.truncf %15 : vector<6x128xf32> to vector<6x128xbf16>
      %c0_14 = arith.constant 0 : index
      %c0_15 = arith.constant 0 : index
      %17 = vector.load %arg6[%c0_14, %c0_15] : memref<6x128xbf16, #tpu.memory_space<vmem>>, vector<6x128xbf16>
      tpu.vector_store %arg6[%c0_14, %c0_15], %16 {strides = array<i32>} : memref<6x128xbf16, #tpu.memory_space<vmem>>, vector<6x128xbf16>,
    } else {
    }
    return
  }
  func.func @transform_0(%arg0: i32, %arg1: i32, %arg2: i32) -> (i32, i32) {
    %c0_i32 = arith.constant 0 : i32
    return %arg0, %arg2 : i32, i32
  }
  func.func @transform_1(%arg0: i32, %arg1: i32, %arg2: i32) -> (i32, i32) {
    %c0_i32 = arith.constant 0 : i32
    return %arg2, %arg1 : i32, i32
  }
  func.func @transform_2(%arg0: i32, %arg1: i32, %arg2: i32) -> (i32, i32) {
    %c0_i32 = arith.constant 0 : i32
    %c0_i32_0 = arith.constant 0 : i32
    return %c0_i32, %arg1 : i32, i32
  }
  func.func @transform_3(%arg0: i32, %arg1: i32, %arg2: i32) -> (i32, i32) {
    %c0_i32 = arith.constant 0 : i32
    return %arg0, %arg1 : i32, i32
  }
}

</mosaic_0001>

<llo_original>
// kernel: tpu_custom_call.1
$region0: #{tpu_custom_call.1}
  #allocation0 [shape = 'u32[]', space=smem, size = 0x4, offset = 0x4, fixed_abs, tag = 'smem constant byte address 0x4 - core index']
  #allocation1 [shape = 'u32[144,128]{1,0:T(1,128)}', space=vmem, size = 0x12000, scoped, tag = 'internal scratch']
  #allocation2 [shape = 'f32[6,128]{1,0:T(8,128)}', space=vmem, size = 0x1000, scoped, tag = 'scratch operand']
  %s0 = inlined_call_operand.hbm [shape: bf16[6,48], index: 0, kind: input, shape index: {}]
  %s1 = inlined_call_operand.hbm [shape: bf16[48,128], index: 1, kind: input, shape index: {}]
  %s2 = inlined_call_operand.vmem [shape: f32[1,128], index: 2, kind: input, shape index: {}]
  %s3 = inlined_call_operand.hbm [shape: bf16[6,128], index: 3, kind: output, shape index: {}]
  %s4 = sld [smem:[#allocation0]]
  $region38: #{tpu_custom_call.1} parent=0
    _
  %s6 = ssub.s32 1, %s4
  %s7 = scalar_select 0, %s6, %s4
  $region1: #{tpu_custom_call.1} parent=0
    #allocation3 [shape = 'u8[2048]{0}', space=vmem, size = 0x800, scoped, tag = 'input window, operand 0, single buffered']
    #allocation4 [shape = 's32[1]{0}', space=sflag, size = 0x4, scoped, tag = 'scoped memory for tpu_custom_call.1']
    #allocation5 [shape = 's32[1]{0}', space=sflag, size = 0x4, scoped, tag = 'scoped memory for tpu_custom_call.1']
    #allocation6 [shape = 'u8[12288]{0}', space=vmem, size = 0x3000, scoped, tag = 'input window, operand 1, single buffered']
    #allocation7 [shape = 's32[1]{0}', space=sflag, size = 0x4, scoped, tag = 'scoped memory for tpu_custom_call.1']
    #allocation8 [shape = 'u8[2048]{0}', space=vmem, size = 0x800, scoped, tag = 'output window, operand 0, single buffered']
    %8 = vsyncpa [#allocation4], 0
    %9 = vsyncpa [#allocation7], 0
    %10 = vsyncpa [#allocation5], 0
    // Predicated region
    $region2: #{tpu_custom_call.1} parent=1 // pred_check
      _
    $region3: #{tpu_custom_call.1} parent=1 // pred_check_branch
      %12 = sbr.rel (0) target = $region5
    $region4: #{tpu_custom_call.1} parent=1 // pred_region
      %s14 = ssub.s32 64, 64
      %15 = vsyncadd [#allocation4], %s14
      %s17 = sshll.u32 [#allocation3], 4
      %s18 = int_to_ptr.vmem [resolvable:$true] %s17
      %20 = dma.hbm_to_vmem [thread:$0]  %s0, 64, %s18, [#allocation4]
    $region5: #{tpu_custom_call.1} parent=1 // pred_fallthru
      _
    // Predicated region
    $region6: #{tpu_custom_call.1} parent=1 // pred_check
      _
    $region7: #{tpu_custom_call.1} parent=1 // pred_check_branch
      %22 = sbr.rel (0) target = $region9
    $region8: #{tpu_custom_call.1} parent=1 // pred_region
      %s24 = ssub.s32 384, 384
      %25 = vsyncadd [#allocation7], %s24
      %s26 = sshll.u32 [#allocation6], 4
      %s27 = int_to_ptr.vmem [resolvable:$true] %s26
      %32 = dma.hbm_to_vmem [thread:$0]  %s1, 384, %s27, [#allocation7], 64, 64, 4
    $region9: #{tpu_custom_call.1} parent=1 // pred_fallthru
      _
    // Predicated region
    $region10: #{tpu_custom_call.1} parent=1 // pred_check
      _
    $region11: #{tpu_custom_call.1} parent=1 // pred_check_branch
      %34 = sbr.rel (0) target = $region13
    $region12: #{tpu_custom_call.1} parent=1 // pred_region
      _
    $region13: #{tpu_custom_call.1} parent=1 // pred_fallthru
      _
    // Predicated region
    $region14: #{tpu_custom_call.1} parent=1 // pred_check
      _
    $region15: #{tpu_custom_call.1} parent=1 // pred_check_branch
      %36 = sbr.rel (0) target = $region17
    $region16: #{tpu_custom_call.1} parent=1 // pred_region
      %37 = dma.done [#allocation4], 64
    $region17: #{tpu_custom_call.1} parent=1 // pred_fallthru
      _
    // Predicated region
    $region18: #{tpu_custom_call.1} parent=1 // pred_check
      _
    $region19: #{tpu_custom_call.1} parent=1 // pred_check_branch
      %39 = sbr.rel (0) target = $region21
    $region20: #{tpu_custom_call.1} parent=1 // pred_region
      %40 = dma.done [#allocation7], 384
    $region21: #{tpu_custom_call.1} parent=1 // pred_fallthru
      _
    %p42 = scmp.eq.s32.totalorder 0, 0
    // Predicated region
    $region22: #{tpu_custom_call.1} parent=1 // pred_check
      %p43 = pneg %p42
    $region23: #{tpu_custom_call.1} parent=1 // pred_check_branch
      %45 = sbr.rel (%p43) target = $region25
    $region24: #{tpu_custom_call.1} parent=1 // pred_region
      %46 = vst [vmem:[#allocation2] sm:$0x3f] 0.0
    $region25: #{tpu_custom_call.1} parent=1 // pred_fallthru
      _
    %v47 = vld [vmem:[#allocation2] sm:$0x3f]
    %v48 = vld [vmem:[#allocation3] sm:$0x7]
    %v49 = vld [vmem:[#allocation6] sm:$0xf]
    %v50 = vld [vmem:[#allocation6 + $0x4] sm:$0xf]
    %v51 = vld [vmem:[#allocation6 + $0x8] sm:$0xf]
    %v52 = vld [vmem:[#allocation6 + $0xc] sm:$0xf]
    %v53 = vld [vmem:[#allocation6 + $0x10] sm:$0xf]
    %v54 = vld [vmem:[#allocation6 + $0x14] sm:$0xf]
    %v61 = vunpack.c.l.b16 %v49
    %v62 = vunpack.c.l.b16 %v50
    %v63 = vunpack.c.l.b16 %v51
    %v64 = vunpack.c.l.b16 %v52
    %v65 = vunpack.c.l.b16 %v53
    %v66 = vunpack.c.l.b16 %v54
    %v67 = vpack.c.b16 %v62, %v61
    %v68 = vpack.c.b16 %v64, %v63
    %v69 = vpack.c.b16 %v66, %v65
    %vm73 = vcmask 392192
    %v75 = vsel %vm73, %v48, 0
    %77 = vmatprep.subr.bf16.mxu0 0
    %78 = vmatpush1.bf16.msra.mxu0 0
    %79 = vmatprep.subr.bf16.mxu0 0
    %80 = vmatpush1.bf16.msra.mxu0 0
    %81 = vmatprep.subr.bf16.mxu0 0
    %82 = vmatpush1.bf16.msra.mxu0 0
    %83 = vmatprep.subr.bf16.mxu0 0
    %84 = vmatpush1.bf16.msra.mxu0 0
    %85 = vmatprep.subr.bf16.mxu0 0
    %86 = vmatpush1.bf16.msra.mxu0 0
    %87 = vmatprep.subr.bf16.mxu0 0
    %88 = vmatpush1.bf16.msra.mxu0 %v69
    %89 = vmatprep.subr.bf16.mxu0 0
    %90 = vmatpush1.bf16.msra.mxu0 %v68
    %91 = vmatprep.subr.bf16.mxu0 0
    %92 = vmatpush1.bf16.msra.mxu0 %v67
    %93 = vmatprep.subr.bf16.mxu0 0
    %94 = vmatpush2.bf16.msra.mxu0 0
    %95 = vmatprep.subr.bf16.mxu0 0
    %96 = vmatpush2.bf16.msra.mxu0 0
    %97 = vmatprep.subr.bf16.mxu0 0
    %98 = vmatpush2.bf16.msra.mxu0 0
    %99 = vmatprep.subr.bf16.mxu0 0
    %100 = vmatpush2.bf16.msra.mxu0 0
    %101 = vmatprep.subr.bf16.mxu0 0
    %102 = vmatpush2.bf16.msra.mxu0 0
    %103 = vmatprep.subr.bf16.mxu0 0
    %104 = vmatpush2.bf16.msra.mxu0 0
    %105 = vmatprep.subr.bf16.mxu0 0
    %106 = vmatpush2.bf16.msra.mxu0 0
    %107 = vmatprep.subr.bf16.mxu0 0
    %108 = vmatpush2.bf16.msra.mxu0 0
    %109 = vmatprep.mubr.bf16.mxu0 0
    %110 = vmatmul.mubr.bf16.gmra.mxu0 %v75
    %v111 = vpop.f32.mrf.mxu0
    %v112 = vadd.f32 0.0, %v111
    %v113 = vpop.f32.mrf.mxu0
    %v114 = vpop.f32.mrf.mxu0
    %v115 = vpop.f32.mrf.mxu0
    %116 = vdwg.mxu0
    %v117 = vadd.f32 %v47, %v112
    %118 = vst [vmem:[#allocation2] sm:$0x3f] %v117
    // Predicated region
    $region26: #{tpu_custom_call.1} parent=1 // pred_check
      %p119 = pneg %p42
    $region27: #{tpu_custom_call.1} parent=1 // pred_check_branch
      %121 = sbr.rel (%p119) target = $region29
    $region28: #{tpu_custom_call.1} parent=1 // pred_region
      %v122 = vld [vmem:[#allocation2] sm:$0x3f]
      %v123 = vld [vmem:[%s2] sm:$0x1]
      %v125 = vlaneseq
      %v126 = vshrl.u32 %v125, 7
      %v127 = vsub.s32 0, %v126
      %v128 = vrot.slane %v123, %v127
      %v130 = vadd.f32 %v122, %v128
      %v131 = vpack.c.bf16 %v130, %v130
      %132 = vst [vmem:[#allocation8] sm:$0x7] %v131
    $region29: #{tpu_custom_call.1} parent=1 // pred_fallthru
      _
    // Predicated region
    $region30: #{tpu_custom_call.1} parent=1 // pred_check
      _
    $region31: #{tpu_custom_call.1} parent=1 // pred_check_branch
      %134 = sbr.rel (0) target = $region33
    $region32: #{tpu_custom_call.1} parent=1 // pred_region
      %s136 = ssub.s32 64, 64
      %137 = vsyncadd [#allocation5], %s136
      %s139 = sshll.u32 [#allocation8], 4
      %s140 = int_to_ptr.vmem [resolvable:$true] %s139
      %142 = dma.vmem_to_hbm [thread:$0]  %s140, 64, %s3, [#allocation5]
    $region33: #{tpu_custom_call.1} parent=1 // pred_fallthru
      _
    // Predicated region
    $region34: #{tpu_custom_call.1} parent=1 // pred_check
      _
    $region35: #{tpu_custom_call.1} parent=1 // pred_check_branch
      %144 = sbr.rel (0) target = $region37
    $region36: #{tpu_custom_call.1} parent=1 // pred_region
      %145 = dma.done [#allocation5], 64
    $region37: #{tpu_custom_call.1} parent=1 // pred_fallthru
      _
    %146 = vsyncpa [#allocation4], 1
    %147 = vsyncpa [#allocation7], 1
    %148 = vsyncpa [#allocation5], 1

</llo_original>
